<compile_context>
chip_gen: v6e
topology: v6e:2x2x1
jax: 0.10.0
libtpu: 0.0.40
codegen_flags: <defaults>
</compile_context>

<pallas_src>
import jax
import jax.numpy as jnp
from jax.experimental import pallas as pl
from jax.experimental.pallas import tpu as pltpu

_LANES = 128
_SUBLANES = 8


def _per_atom_energy_sumsq_kernel(x_ref, out_ref):
    # x_ref  : (3, S, 128) f32 in VMEM
    #          row 0 = predicted total energies  (zero padded)
    #          row 1 = true total energies       (zero padded)
    #          row 2 = atoms per structure       (padded with 1.0)
    # out_ref: (1, 1) f32 in SMEM -- raw sum of squared per-atom residuals
    pred = x_ref[0]
    true = x_ref[1]
    inv_n = pl.reciprocal(x_ref[2], approx=False)   # exact reciprocal (EUP slot)
    diff = (pred - true) * inv_n                    # sub + mul only on the VPU
    out_ref[0, 0] = jnp.sum(diff * diff)


def per_atom_energy_loss(pred_energy, true_energy, n_atoms_per_structure):
    """PerAtomEnergyLoss('energy', RMSE()) forward pass.

    pred_energy, true_energy : [B] total energies per structure
    n_atoms_per_structure    : [B] atom counts per structure
    returns                  : scalar f32 loss
    """
    B = pred_energy.shape[0]

    # Pad each property to a lane+sublane-dense slab: multiple of 8*128 f32
    # (one full vreg of 1024 elements per property at minimum).
    slab = _SUBLANES * _LANES
    Bp = ((B + slab - 1) // slab) * slab
    S = Bp // _LANES
    pad = Bp - B

    pred = pred_energy.astype(jnp.float32)
    true = true_energy.astype(jnp.float32)
    n = n_atoms_per_structure.astype(jnp.float32)

    # Padding: pred = true = 0, n = 1  =>  padded residuals are exactly 0.
    pred_p = jnp.pad(pred, (0, pad))
    true_p = jnp.pad(true, (0, pad))
    n_p = jnp.pad(n, (0, pad), constant_values=1.0)

    # Single stacked operand -> single HBM->VMEM DMA for the whole kernel.
    stacked = jnp.stack(
        [
            pred_p.reshape(S, _LANES),
            true_p.reshape(S, _LANES),
            n_p.reshape(S, _LANES),
        ],
        axis=0,
    )

    ssq = pl.pallas_call(
        _per_atom_energy_sumsq_kernel,
        out_shape=jax.ShapeDtypeStruct((1, 1), jnp.float32),
        in_specs=[pl.BlockSpec(memory_space=pltpu.MemorySpace.VMEM)],
        out_specs=pl.BlockSpec(memory_space=pltpu.MemorySpace.SMEM),
    )(stacked)

    # Scalar epilogue in the wrapper: divide by the TRUE batch size (not the
    # padded size) and take the square root -> RMSE.
    return jnp.sqrt(ssq[0, 0] / B)


if __name__ == "__main__":
    key = jax.random.PRNGKey(0)
    k1, k2, k3 = jax.random.split(key, 3)

    B = 8  # number of structures in the batch
    # atom counts per structure (as the AtomicGraph batch would supply)
    n_atoms = jax.random.randint(k1, (B,), minval=3, maxval=20).astype(jnp.float32)
    # synthetic true total energies (~ -1.5 eV per atom + noise)
    true_energy = -1.5 * n_atoms + 0.3 * jax.random.normal(k2, (B,))
    # synthetic model predictions (true + small error)
    pred_energy = true_energy + 0.05 * jax.random.normal(k3, (B,))

    loss = per_atom_energy_loss(pred_energy, true_energy, n_atoms)
    loss = jax.block_until_ready(loss)

    # pure-JAX reference, matching torch: divide both sides per atom, then RMSE
    ref = jnp.sqrt(jnp.mean((pred_energy / n_atoms - true_energy / n_atoms) ** 2))
    assert jnp.allclose(loss, ref, rtol=1e-5, atol=1e-6), (loss, ref)

    print("KERNEL_OK")
</pallas_src>

<mosaic_0001>
module attributes {stable_mosaic.version = 11 : i64} {
  func.func @_per_atom_energy_sumsq_kernel(%arg0: memref<3x8x128xf32, #tpu.memory_space<vmem>>, %arg1: memref<1x1xf32, #tpu.memory_space<smem>>) attributes {dimension_semantics = [], scalar_prefetch = 0 : i64, scratch_operands = 0 : i64, tpu.core_type = #tpu.core_type<tc>} {
    %c0 = arith.constant 0 : index
    %c0_0 = arith.constant 0 : index
    %c0_1 = arith.constant 0 : index
    %0 = vector.load %arg0[%c0, %c0_0, %c0_1] : memref<3x8x128xf32, #tpu.memory_space<vmem>>, vector<1x8x128xf32>
    %1 = vector.shape_cast %0 : vector<1x8x128xf32> to vector<8x128xf32>
    %c1 = arith.constant 1 : index
    %c0_2 = arith.constant 0 : index
    %c0_3 = arith.constant 0 : index
    %2 = vector.load %arg0[%c1, %c0_2, %c0_3] : memref<3x8x128xf32, #tpu.memory_space<vmem>>, vector<1x8x128xf32>
    %3 = vector.shape_cast %2 : vector<1x8x128xf32> to vector<8x128xf32>
    %c2 = arith.constant 2 : index
    %c0_4 = arith.constant 0 : index
    %c0_5 = arith.constant 0 : index
    %4 = vector.load %arg0[%c2, %c0_4, %c0_5] : memref<3x8x128xf32, #tpu.memory_space<vmem>>, vector<1x8x128xf32>
    %5 = vector.shape_cast %4 : vector<1x8x128xf32> to vector<8x128xf32>
    %6 = tpu.reciprocal %5 : vector<8x128xf32> -> vector<8x128xf32>
    %7 = arith.subf %1, %3 : vector<8x128xf32>
    %8 = arith.mulf %7, %6 : vector<8x128xf32>
    %9 = arith.mulf %8, %8 : vector<8x128xf32>
    %10 = vector.shape_cast %9 : vector<8x128xf32> to vector<1x8x128xf32>
    %cst = arith.constant dense<0.000000e+00> : vector<1xf32>
    %11 = vector.multi_reduction <add>, %10, %cst [1, 2] : vector<1x8x128xf32> to vector<1xf32>
    %12 = vector.shape_cast %11 : vector<1xf32> to vector<1x1x1xf32>
    %13 = vector.extract %12[0, 0, 0] : f32 from vector<1x1x1xf32>
    %c0_6 = arith.constant 0 : index
    %c0_7 = arith.constant 0 : index
    %14 = memref.load %arg1[%c0_6, %c0_7] : memref<1x1xf32, #tpu.memory_space<smem>>
    memref.store %13, %arg1[%c0_6, %c0_7] : memref<1x1xf32, #tpu.memory_space<smem>>
    return
  }
}

</mosaic_0001>

<llo_original>
// kernel: tpu_custom_call.1
$region0: #{tpu_custom_call.1}
  #allocation0 [shape = 'u32[]', space=smem, size = 0x4, offset = 0x4, fixed_abs, tag = 'smem constant byte address 0x4 - core index']
  #allocation1 [shape = 'u32[144,128]{1,0:T(1,128)}', space=vmem, size = 0x12000, scoped, tag = 'internal scratch']
  %s0 = inlined_call_operand.hbm [shape: f32[3,8,128], index: 0, kind: input, shape index: {}]
  %s1 = inlined_call_operand.hbm [shape: f32[1,1], index: 1, kind: output, shape index: {}]
  %s2 = sld [smem:[#allocation0]]
  $region18: #{tpu_custom_call.1} parent=0
    _
  %s4 = ssub.s32 1, %s2
  %s5 = scalar_select 0, %s4, %s2
  $region1: #{tpu_custom_call.1} parent=0
    #allocation2 [shape = 'u8[12288]{0}', space=vmem, size = 0x3000, scoped, tag = 'input window, operand 0, single buffered']
    #allocation3 [shape = 's32[1]{0}', space=sflag, size = 0x4, scoped, tag = 'scoped memory for tpu_custom_call.1']
    #allocation4 [shape = 's32[1]{0}', space=sflag, size = 0x4, scoped, tag = 'scoped memory for tpu_custom_call.1']
    #allocation5 [shape = 'u8[512]{0}', space=smem, size = 0x200, scoped, tag = 'output window, operand 0, single buffered']
    %6 = vsyncpa [#allocation3], 0
    %7 = vsyncpa [#allocation4], 0
    // Predicated region
    $region2: #{tpu_custom_call.1} parent=1 // pred_check
      _
    $region3: #{tpu_custom_call.1} parent=1 // pred_check_branch
      %9 = sbr.rel (0) target = $region5
    $region4: #{tpu_custom_call.1} parent=1 // pred_region
      %s11 = ssub.s32 384, 384
      %12 = vsyncadd [#allocation3], %s11
      %s13 = sshll.u32 [#allocation2], 4
      %s14 = int_to_ptr.vmem [resolvable:$true] %s13
      %19 = dma.hbm_to_vmem [thread:$0]  %s0, 384, %s14, [#allocation3], 128, 128, 8
    $region5: #{tpu_custom_call.1} parent=1 // pred_fallthru
      _
    // Predicated region
    $region6: #{tpu_custom_call.1} parent=1 // pred_check
      _
    $region7: #{tpu_custom_call.1} parent=1 // pred_check_branch
      %21 = sbr.rel (0) target = $region9
    $region8: #{tpu_custom_call.1} parent=1 // pred_region
      %22 = dma.done [#allocation3], 384
    $region9: #{tpu_custom_call.1} parent=1 // pred_fallthru
      _
    %v23 = vld [vmem:[#allocation2] sm:$0xff]
    %s24 = scalar_lea.vmem [#allocation2], 8
    %v25 = vld [vmem:[%s24] sm:$0xff]
    %s26 = scalar_lea.vmem [#allocation2], 16
    %v27 = vld [vmem:[%s26] sm:$0xff]
    %v28 = vrcp.pop %v27
    %v29 = vsub.f32 %v23, %v25
    %v30 = vmul.f32 %v29, %v28
    %v31 = vmul.f32 %v30, %v30
    %32 = vadd.xlane.f32.xlu0 %v31
    %v33 = vpop.xlane.xlu0 %32
    %v34 = vrot.slane %v33, 4
    %v35 = vadd.f32 %v33, %v34
    %v36 = vrot.slane %v35, 2
    %v37 = vadd.f32 %v35, %v36
    %v38 = vrot.slane %v37, 1
    %v39 = vadd.f32 %v37, %v38
    %s40 = vtos %v39
    %s41 = scalar_lea.smem [#allocation5], 0
    %42 = sst [smem:[%s41]] %s40
    // Predicated region
    $region10: #{tpu_custom_call.1} parent=1 // pred_check
      _
    $region11: #{tpu_custom_call.1} parent=1 // pred_check_branch
      %44 = sbr.rel (0) target = $region13
    $region12: #{tpu_custom_call.1} parent=1 // pred_region
      %s46 = ssub.s32 16, 16
      %47 = vsyncadd [#allocation4], %s46
      %50 = dma.smem_to_hbm [#allocation5], 16, %s1, [#allocation4]
    $region13: #{tpu_custom_call.1} parent=1 // pred_fallthru
      _
    // Predicated region
    $region14: #{tpu_custom_call.1} parent=1 // pred_check
      _
    $region15: #{tpu_custom_call.1} parent=1 // pred_check_branch
      %52 = sbr.rel (0) target = $region17
    $region16: #{tpu_custom_call.1} parent=1 // pred_region
      %53 = dma.done [#allocation4], 16
    $region17: #{tpu_custom_call.1} parent=1 // pred_fallthru
      _
    %54 = sfence
    %55 = vsyncpa [#allocation3], 1
    %56 = vsyncpa [#allocation4], 1

</llo_original>
